<compile_context>
chip_gen: v5e
topology: v5e:2x2
jax: 0.10.0
libtpu: 0.0.40
codegen_flags: <defaults>
</compile_context>

<pallas_src>
import functools

import jax
import jax.numpy as jnp
import numpy as np
from jax.experimental import pallas as pl
from jax.experimental.pallas import tpu as pltpu


def _leaky_relu(x, slope=0.1):  # nn.LeakyReLU(0.1); max form (valid for 0<slope<1)
    return jnp.maximum(x, slope * x)


def _res_block_kernel(x_ref, w1_ref, b1_ref, w2_ref, b2_ref, w3_ref, b3_ref,
                      mask_ref, o_ref, *, W, Cm, res_bool, need_skip):
    # x_ref:    (Cin, NHW)        -- channels on sublanes, batch*pixels on lanes
    # w1_ref:   (Cm [+Cout], Cin), b1_ref: (Cm [+Cout], 1)   (skip fused if needed)
    # w2_ref:   (Cm, Cm),          b2_ref: (Cm, 1)
    # w3_ref:   (Cout, 9*Cm) im2col weight, b3_ref: (Cout, 1)
    # mask_ref: (9, NHW) f32 0/1 boundary masks (precomputed in the wrapper)
    # o_ref:    (Cout, NHW)
    NHW = x_ref.shape[1]
    x = x_ref[...]

    # ---- conv1 (1x1) fused with the skip 1x1 projection --------------------
    h1 = jnp.dot(w1_ref[...], x, preferred_element_type=jnp.float32) + b1_ref[...]
    h = _leaky_relu(h1[:Cm, :])
    if res_bool:
        skip = h1[Cm:, :] if need_skip else x   # cnn_skip has no activation

    # ---- conv2 (1x1) --------------------------------------------------------
    h = _leaky_relu(
        jnp.dot(w2_ref[...], h, preferred_element_type=jnp.float32) + b2_ref[...])

    # ---- conv3 (3x3, pad 1) as ONE im2col matmul ----------------------------
    # Tap (dy, dx) at flat lane g needs h[:, g + dy*W + dx]; the precomputed
    # mask zeroes taps that fall outside their own image (rows/cols and any
    # roll wraparound across images / array ends).
    taps = []
    k = 0
    for dy in (-1, 0, 1):
        for dx in (-1, 0, 1):
            d = dy * W + dx
            # pltpu.roll == np.roll: out[i] = in[(i - shift) % n] -> shift = -d
            t = pltpu.roll(h, shift=(-d) % NHW, axis=1) if d else h
            if d:
                t = t * mask_ref[k:k + 1, :]      # sublane-broadcast 0/1 mask
            taps.append(t)
            k += 1
    cols = jnp.concatenate(taps, axis=0)          # (9*Cm, NHW), sublane-aligned
    h3 = _leaky_relu(
        jnp.dot(w3_ref[...], cols, preferred_element_type=jnp.float32)
        + b3_ref[...])

    # ---- residual add + lane-dense store ------------------------------------
    fx = (skip + h3) if res_bool else h3
    o_ref[...] = fx.astype(o_ref.dtype)


def _make_boundary_mask(N, H, W):
    """(9, N*H*W) 0/1 f32 mask: tap (dy,dx) valid iff the source pixel is
    inside the SAME image (batch is concatenated along the lane axis)."""
    HW = H * W
    p = np.arange(N * HW)
    pix = p % HW
    row = pix // W
    col = pix % W
    mask = np.empty((9, N * HW), np.float32)
    k = 0
    for dy in (-1, 0, 1):
        for dx in (-1, 0, 1):
            valid = ((row + dy >= 0) & (row + dy < H) &
                     (col + dx >= 0) & (col + dx < W))
            mask[k] = valid.astype(np.float32)
            k += 1
    return jnp.asarray(mask)


def res_block_pallas(x_nchw, params, res_bool=True):
    """ResBlock forward. x_nchw: (N, Cin, H, W) f32 -> (N, Cout, H, W)."""
    w1, b1, w2, b2, w3, b3, ws, bs = params      # PyTorch-style layouts
    N, Cin, H, W = x_nchw.shape
    Cm = w1.shape[0]
    Cout = w3.shape[0]
    HW = H * W
    NHW = N * HW
    need_skip = bool(res_bool) and (Cin != Cout)

    # (N, Cin, H, W) -> (Cin, N*HW): batch folded onto the lane axis.
    x = jnp.transpose(x_nchw.astype(jnp.float32), (1, 0, 2, 3)).reshape(Cin, NHW)

    # Fuse cnn_skip into conv1 (one matmul over x instead of two).
    if need_skip:
        w1f = jnp.concatenate([w1, ws], axis=0)               # (Cm+Cout, Cin)
        b1f = jnp.concatenate([b1, bs], axis=0)[:, None]      # (Cm+Cout, 1)
    else:
        w1f = w1
        b1f = b1[:, None]
    C1 = w1f.shape[0]

    # im2col weight: (Cout, Cm, 3, 3) -> (Cout, (ky, kx, c)) = (Cout, 9*Cm)
    w3m = jnp.transpose(w3, (0, 2, 3, 1)).reshape(Cout, 9 * Cm)
    b2c = b2[:, None]
    b3c = b3[:, None]
    mask = _make_boundary_mask(N, H, W)                        # (9, NHW)

    kernel = functools.partial(_res_block_kernel, W=W, Cm=Cm,
                               res_bool=bool(res_bool), need_skip=need_skip)

    out = pl.pallas_call(
        kernel,
        out_shape=jax.ShapeDtypeStruct((Cout, NHW), jnp.float32),
        grid_spec=pltpu.PrefetchScalarGridSpec(
            num_scalar_prefetch=0,
            grid=(1,),                                        # single step: whole
            in_specs=[                                        # batch at once
                pl.BlockSpec((Cin, NHW), lambda i: (0, 0)),
                pl.BlockSpec((C1, Cin), lambda i: (0, 0)),
                pl.BlockSpec((C1, 1), lambda i: (0, 0)),
                pl.BlockSpec((Cm, Cm), lambda i: (0, 0)),
                pl.BlockSpec((Cm, 1), lambda i: (0, 0)),
                pl.BlockSpec((Cout, 9 * Cm), lambda i: (0, 0)),
                pl.BlockSpec((Cout, 1), lambda i: (0, 0)),
                pl.BlockSpec((9, NHW), lambda i: (0, 0)),
            ],
            out_specs=pl.BlockSpec((Cout, NHW), lambda i: (0, 0)),
        ),
        compiler_params=pltpu.CompilerParams(
            dimension_semantics=("arbitrary",)),
    )(x, w1f, b1f, w2, b2c, w3m, b3c, mask)

    # (Cout, N*HW) -> (N, Cout, H, W)
    return jnp.transpose(out.reshape(Cout, N, H, W), (1, 0, 2, 3))


def res_block_reference(x, params, res_bool=True):
    """Pure-JAX NCHW reference (independent of the kernel) for checking."""
    w1, b1, w2, b2, w3, b3, ws, bs = params
    N, Cin, H, W = x.shape
    Cout = w3.shape[0]
    hp_prec = jax.lax.Precision.HIGHEST

    def lrelu(v):
        return jnp.where(v > 0, v, 0.1 * v)

    h = lrelu(jnp.einsum("nchw,dc->ndhw", x, w1, precision=hp_prec)
              + b1[None, :, None, None])
    h = lrelu(jnp.einsum("nchw,dc->ndhw", h, w2, precision=hp_prec)
              + b2[None, :, None, None])
    hp = jnp.pad(h, ((0, 0), (0, 0), (1, 1), (1, 1)))
    acc = jnp.zeros((N, Cout, H, W), jnp.float32)
    for ky in range(3):
        for kx in range(3):
            acc = acc + jnp.einsum("nchw,dc->ndhw",
                                   hp[:, :, ky:ky + H, kx:kx + W],
                                   w3[:, :, ky, kx], precision=hp_prec)
    h3 = lrelu(acc + b3[None, :, None, None])

    if res_bool:
        if Cin != Cout:
            skip = (jnp.einsum("nchw,dc->ndhw", x, ws, precision=hp_prec)
                    + bs[None, :, None, None])
        else:
            skip = x
        return skip + h3
    return h3


def init_params(key, cin, cm, cout):
    """Deterministic synthetic parameters in PyTorch Conv2d layouts."""
    ks = jax.random.split(key, 8)
    s = 0.1
    w1 = s * jax.random.normal(ks[0], (cm, cin), jnp.float32)
    b1 = s * jax.random.normal(ks[1], (cm,), jnp.float32)
    w2 = s * jax.random.normal(ks[2], (cm, cm), jnp.float32)
    b2 = s * jax.random.normal(ks[3], (cm,), jnp.float32)
    w3 = s * jax.random.normal(ks[4], (cout, cm, 3, 3), jnp.float32)
    b3 = s * jax.random.normal(ks[5], (cout,), jnp.float32)
    ws = s * jax.random.normal(ks[6], (cout, cin), jnp.float32)
    bs = s * jax.random.normal(ks[7], (cout,), jnp.float32)
    return (w1, b1, w2, b2, w3, b3, ws, bs)


if __name__ == "__main__":
    key = jax.random.PRNGKey(0)
    kx1, kp1, kx2, kp2 = jax.random.split(key, 4)

    # Config 1: ResBlock(channals_out=8, channals_m=8, channals_in=4, Res_bool=True)
    N, Cin, H, W = 2, 4, 16, 16
    Cm, Cout = 8, 8
    x = jax.random.normal(kx1, (N, Cin, H, W), jnp.float32)
    params = init_params(kp1, Cin, Cm, Cout)

    out = jax.block_until_ready(res_block_pallas(x, params, res_bool=True))
    ref = jax.block_until_ready(res_block_reference(x, params, res_bool=True))
    np.testing.assert_allclose(np.asarray(out), np.asarray(ref),
                               rtol=1e-2, atol=1e-2)
    assert out.shape == (N, Cout, H, W)

    # Config 2: identity-skip path (channals_in == channals_out == 8)
    x2 = jax.random.normal(kx2, (N, 8, H, W), jnp.float32)
    params2 = init_params(kp2, 8, 8, 8)
    out2 = jax.block_until_ready(res_block_pallas(x2, params2, res_bool=True))
    ref2 = jax.block_until_ready(res_block_reference(x2, params2, res_bool=True))
    np.testing.assert_allclose(np.asarray(out2), np.asarray(ref2),
                               rtol=1e-2, atol=1e-2)

    # Config 3: Res_bool=False branch
    out3 = jax.block_until_ready(res_block_pallas(x, params, res_bool=False))
    ref3 = jax.block_until_ready(res_block_reference(x, params, res_bool=False))
    np.testing.assert_allclose(np.asarray(out3), np.asarray(ref3),
                               rtol=1e-2, atol=1e-2)

    print("KERNEL_OK")
</pallas_src>

<mosaic_0001>
module attributes {stable_mosaic.version = 11 : i64} {
  func.func @_res_block_kernel(%arg0: i32, %arg1: memref<4x512xf32, #tpu.memory_space<vmem>>, %arg2: memref<16x4xf32, #tpu.memory_space<vmem>>, %arg3: memref<16x1xf32, #tpu.memory_space<vmem>>, %arg4: memref<8x8xf32, #tpu.memory_space<vmem>>, %arg5: memref<8x1xf32, #tpu.memory_space<vmem>>, %arg6: memref<8x72xf32, #tpu.memory_space<vmem>>, %arg7: memref<8x1xf32, #tpu.memory_space<vmem>>, %arg8: memref<9x512xf32, #tpu.memory_space<vmem>>, %arg9: memref<8x512xf32, #tpu.memory_space<vmem>>) attributes {dimension_semantics = [#tpu.dimension_semantics<arbitrary>], iteration_bounds = array<i64: 1>, scalar_prefetch = 0 : i64, scratch_operands = 0 : i64, tpu.core_type = #tpu.core_type<tc>, window_params = [{pipeline_mode = #tpu.pipeline_mode<synchronous>, transform_indices = @transform_0, window_bounds = array<i64: 4, 512>}, {pipeline_mode = #tpu.pipeline_mode<synchronous>, transform_indices = @transform_1, window_bounds = array<i64: 16, 4>}, {pipeline_mode = #tpu.pipeline_mode<synchronous>, transform_indices = @transform_2, window_bounds = array<i64: 16, 1>}, {pipeline_mode = #tpu.pipeline_mode<synchronous>, transform_indices = @transform_3, window_bounds = array<i64: 8, 8>}, {pipeline_mode = #tpu.pipeline_mode<synchronous>, transform_indices = @transform_4, window_bounds = array<i64: 8, 1>}, {pipeline_mode = #tpu.pipeline_mode<synchronous>, transform_indices = @transform_5, window_bounds = array<i64: 8, 72>}, {pipeline_mode = #tpu.pipeline_mode<synchronous>, transform_indices = @transform_6, window_bounds = array<i64: 8, 1>}, {pipeline_mode = #tpu.pipeline_mode<synchronous>, transform_indices = @transform_7, window_bounds = array<i64: 9, 512>}, {pipeline_mode = #tpu.pipeline_mode<synchronous>, transform_indices = @transform_8, window_bounds = array<i64: 8, 512>}]} {
    %c0 = arith.constant 0 : index
    %c0_0 = arith.constant 0 : index
    %0 = vector.load %arg1[%c0, %c0_0] : memref<4x512xf32, #tpu.memory_space<vmem>>, vector<4x512xf32>
    %c0_1 = arith.constant 0 : index
    %c0_2 = arith.constant 0 : index
    %1 = vector.load %arg2[%c0_1, %c0_2] : memref<16x4xf32, #tpu.memory_space<vmem>>, vector<16x4xf32>
    %cst = arith.constant dense<0.000000e+00> : vector<16x512xf32>
    %2 = tpu.matmul %1, %0, %cst {dimension_numbers = #tpu.dot_dimension_numbers<[1], [0], [0], [1], [0, 0, 1, 1], [], []>} : vector<16x4xf32>, vector<4x512xf32>, vector<16x512xf32> -> vector<16x512xf32>
    %c0_3 = arith.constant 0 : index
    %c0_4 = arith.constant 0 : index
    %3 = vector.load %arg3[%c0_3, %c0_4] : memref<16x1xf32, #tpu.memory_space<vmem>>, vector<16x1xf32>
    %4 = vector.broadcast %3 : vector<16x1xf32> to vector<16x512xf32>
    %5 = arith.addf %2, %4 : vector<16x512xf32>
    %6 = vector.extract_strided_slice %5 {offsets = [0, 0], sizes = [8, 512], strides = [1, 1]} : vector<16x512xf32> to vector<8x512xf32>
    %cst_5 = arith.constant 1.000000e-01 : f32
    %7 = vector.broadcast %cst_5 : f32 to vector<8x512xf32>
    %8 = arith.mulf %7, %6 : vector<8x512xf32>
    %9 = arith.maximumf %6, %8 : vector<8x512xf32>
    %10 = vector.extract_strided_slice %5 {offsets = [8, 0], sizes = [8, 512], strides = [1, 1]} : vector<16x512xf32> to vector<8x512xf32>
    %c0_6 = arith.constant 0 : index
    %c0_7 = arith.constant 0 : index
    %11 = vector.load %arg4[%c0_6, %c0_7] : memref<8x8xf32, #tpu.memory_space<vmem>>, vector<8x8xf32>
    %cst_8 = arith.constant dense<0.000000e+00> : vector<8x512xf32>
    %12 = tpu.matmul %11, %9, %cst_8 {dimension_numbers = #tpu.dot_dimension_numbers<[1], [0], [0], [1], [0, 0, 1, 1], [], []>} : vector<8x8xf32>, vector<8x512xf32>, vector<8x512xf32> -> vector<8x512xf32>
    %c0_9 = arith.constant 0 : index
    %c0_10 = arith.constant 0 : index
    %13 = vector.load %arg5[%c0_9, %c0_10] : memref<8x1xf32, #tpu.memory_space<vmem>>, vector<8x1xf32>
    %14 = vector.broadcast %13 : vector<8x1xf32> to vector<8x512xf32>
    %15 = arith.addf %12, %14 : vector<8x512xf32>
    %cst_11 = arith.constant 1.000000e-01 : f32
    %16 = vector.broadcast %cst_11 : f32 to vector<8x512xf32>
    %17 = arith.mulf %16, %15 : vector<8x512xf32>
    %18 = arith.maximumf %15, %17 : vector<8x512xf32>
    %c17_i32 = arith.constant 17 : i32
    %19 = tpu.dynamic_rotate %18 by %c17_i32 dim 1 : vector<8x512xf32>, i32 -> vector<8x512xf32>
    %c0_12 = arith.constant 0 : index
    %c0_13 = arith.constant 0 : index
    %20 = vector.load %arg8[%c0_12, %c0_13] : memref<9x512xf32, #tpu.memory_space<vmem>>, vector<1x512xf32>
    %21 = vector.broadcast %20 : vector<1x512xf32> to vector<8x512xf32>
    %22 = arith.mulf %19, %21 : vector<8x512xf32>
    %c16_i32 = arith.constant 16 : i32
    %23 = tpu.dynamic_rotate %18 by %c16_i32 dim 1 : vector<8x512xf32>, i32 -> vector<8x512xf32>
    %c1 = arith.constant 1 : index
    %c0_14 = arith.constant 0 : index
    %24 = vector.load %arg8[%c1, %c0_14] : memref<9x512xf32, #tpu.memory_space<vmem>>, vector<1x512xf32>
    %25 = vector.broadcast %24 : vector<1x512xf32> to vector<8x512xf32>
    %26 = arith.mulf %23, %25 : vector<8x512xf32>
    %c15_i32 = arith.constant 15 : i32
    %27 = tpu.dynamic_rotate %18 by %c15_i32 dim 1 : vector<8x512xf32>, i32 -> vector<8x512xf32>
    %c2 = arith.constant 2 : index
    %c0_15 = arith.constant 0 : index
    %28 = vector.load %arg8[%c2, %c0_15] : memref<9x512xf32, #tpu.memory_space<vmem>>, vector<1x512xf32>
    %29 = vector.broadcast %28 : vector<1x512xf32> to vector<8x512xf32>
    %30 = arith.mulf %27, %29 : vector<8x512xf32>
    %c1_i32 = arith.constant 1 : i32
    %31 = tpu.dynamic_rotate %18 by %c1_i32 dim 1 : vector<8x512xf32>, i32 -> vector<8x512xf32>
    %c3 = arith.constant 3 : index
    %c0_16 = arith.constant 0 : index
    %32 = vector.load %arg8[%c3, %c0_16] : memref<9x512xf32, #tpu.memory_space<vmem>>, vector<1x512xf32>
    %33 = vector.broadcast %32 : vector<1x512xf32> to vector<8x512xf32>
    %34 = arith.mulf %31, %33 : vector<8x512xf32>
    %c511_i32 = arith.constant 511 : i32
    %35 = tpu.dynamic_rotate %18 by %c511_i32 dim 1 : vector<8x512xf32>, i32 -> vector<8x512xf32>
    %c5 = arith.constant 5 : index
    %c0_17 = arith.constant 0 : index
    %36 = vector.load %arg8[%c5, %c0_17] : memref<9x512xf32, #tpu.memory_space<vmem>>, vector<1x512xf32>
    %37 = vector.broadcast %36 : vector<1x512xf32> to vector<8x512xf32>
    %38 = arith.mulf %35, %37 : vector<8x512xf32>
    %c497_i32 = arith.constant 497 : i32
    %39 = tpu.dynamic_rotate %18 by %c497_i32 dim 1 : vector<8x512xf32>, i32 -> vector<8x512xf32>
    %c6 = arith.constant 6 : index
    %c0_18 = arith.constant 0 : index
    %40 = vector.load %arg8[%c6, %c0_18] : memref<9x512xf32, #tpu.memory_space<vmem>>, vector<1x512xf32>
    %41 = vector.broadcast %40 : vector<1x512xf32> to vector<8x512xf32>
    %42 = arith.mulf %39, %41 : vector<8x512xf32>
    %c496_i32 = arith.constant 496 : i32
    %43 = tpu.dynamic_rotate %18 by %c496_i32 dim 1 : vector<8x512xf32>, i32 -> vector<8x512xf32>
    %c7 = arith.constant 7 : index
    %c0_19 = arith.constant 0 : index
    %44 = vector.load %arg8[%c7, %c0_19] : memref<9x512xf32, #tpu.memory_space<vmem>>, vector<1x512xf32>
    %45 = vector.broadcast %44 : vector<1x512xf32> to vector<8x512xf32>
    %46 = arith.mulf %43, %45 : vector<8x512xf32>
    %c495_i32 = arith.constant 495 : i32
    %47 = tpu.dynamic_rotate %18 by %c495_i32 dim 1 : vector<8x512xf32>, i32 -> vector<8x512xf32>
    %c8 = arith.constant 8 : index
    %c0_20 = arith.constant 0 : index
    %48 = vector.load %arg8[%c8, %c0_20] : memref<9x512xf32, #tpu.memory_space<vmem>>, vector<1x512xf32>
    %49 = vector.broadcast %48 : vector<1x512xf32> to vector<8x512xf32>
    %50 = arith.mulf %47, %49 : vector<8x512xf32>
    %51 = tpu.concatenate %22, %26, %30, %34, %18, %38, %42, %46, %50 in 0 : vector<8x512xf32>, vector<8x512xf32>, vector<8x512xf32>, vector<8x512xf32>, vector<8x512xf32>, vector<8x512xf32>, vector<8x512xf32>, vector<8x512xf32>, vector<8x512xf32> -> vector<72x512xf32>
    %c0_21 = arith.constant 0 : index
    %c0_22 = arith.constant 0 : index
    %52 = vector.load %arg6[%c0_21, %c0_22] : memref<8x72xf32, #tpu.memory_space<vmem>>, vector<8x72xf32>
    %cst_23 = arith.constant dense<0.000000e+00> : vector<8x512xf32>
    %53 = tpu.matmul %52, %51, %cst_23 {dimension_numbers = #tpu.dot_dimension_numbers<[1], [0], [0], [1], [0, 0, 1, 1], [], []>} : vector<8x72xf32>, vector<72x512xf32>, vector<8x512xf32> -> vector<8x512xf32>
    %c0_24 = arith.constant 0 : index
    %c0_25 = arith.constant 0 : index
    %54 = vector.load %arg7[%c0_24, %c0_25] : memref<8x1xf32, #tpu.memory_space<vmem>>, vector<8x1xf32>
    %55 = vector.broadcast %54 : vector<8x1xf32> to vector<8x512xf32>
    %56 = arith.addf %53, %55 : vector<8x512xf32>
    %cst_26 = arith.constant 1.000000e-01 : f32
    %57 = vector.broadcast %cst_26 : f32 to vector<8x512xf32>
    %58 = arith.mulf %57, %56 : vector<8x512xf32>
    %59 = arith.maximumf %56, %58 : vector<8x512xf32>
    %60 = arith.addf %10, %59 : vector<8x512xf32>
    %c0_27 = arith.constant 0 : index
    %c0_28 = arith.constant 0 : index
    %61 = vector.load %arg9[%c0_27, %c0_28] : memref<8x512xf32, #tpu.memory_space<vmem>>, vector<8x512xf32>
    tpu.vector_store %arg9[%c0_27, %c0_28], %60 {strides = array<i32>} : memref<8x512xf32, #tpu.memory_space<vmem>>, vector<8x512xf32>,
    return
  }
  func.func @transform_0(%arg0: i32) -> (i32, i32) {
    %c0_i32 = arith.constant 0 : i32
    %c0_i32_0 = arith.constant 0 : i32
    %c0_i32_1 = arith.constant 0 : i32
    return %c0_i32, %c0_i32_0 : i32, i32
  }
  func.func @transform_1(%arg0: i32) -> (i32, i32) {
    %c0_i32 = arith.constant 0 : i32
    %c0_i32_0 = arith.constant 0 : i32
    %c0_i32_1 = arith.constant 0 : i32
    return %c0_i32, %c0_i32_0 : i32, i32
  }
  func.func @transform_2(%arg0: i32) -> (i32, i32) {
    %c0_i32 = arith.constant 0 : i32
    %c0_i32_0 = arith.constant 0 : i32
    %c0_i32_1 = arith.constant 0 : i32
    return %c0_i32, %c0_i32_0 : i32, i32
  }
  func.func @transform_3(%arg0: i32) -> (i32, i32) {
    %c0_i32 = arith.constant 0 : i32
    %c0_i32_0 = arith.constant 0 : i32
    %c0_i32_1 = arith.constant 0 : i32
    return %c0_i32, %c0_i32_0 : i32, i32
  }
  func.func @transform_4(%arg0: i32) -> (i32, i32) {
    %c0_i32 = arith.constant 0 : i32
    %c0_i32_0 = arith.constant 0 : i32
    %c0_i32_1 = arith.constant 0 : i32
    return %c0_i32, %c0_i32_0 : i32, i32
  }
  func.func @transform_5(%arg0: i32) -> (i32, i32) {
    %c0_i32 = arith.constant 0 : i32
    %c0_i32_0 = arith.constant 0 : i32
    %c0_i32_1 = arith.constant 0 : i32
    return %c0_i32, %c0_i32_0 : i32, i32
  }
  func.func @transform_6(%arg0: i32) -> (i32, i32) {
    %c0_i32 = arith.constant 0 : i32
    %c0_i32_0 = arith.constant 0 : i32
    %c0_i32_1 = arith.constant 0 : i32
    return %c0_i32, %c0_i32_0 : i32, i32
  }
  func.func @transform_7(%arg0: i32) -> (i32, i32) {
    %c0_i32 = arith.constant 0 : i32
    %c0_i32_0 = arith.constant 0 : i32
    %c0_i32_1 = arith.constant 0 : i32
    return %c0_i32, %c0_i32_0 : i32, i32
  }
  func.func @transform_8(%arg0: i32) -> (i32, i32) {
    %c0_i32 = arith.constant 0 : i32
    %c0_i32_0 = arith.constant 0 : i32
    %c0_i32_1 = arith.constant 0 : i32
    return %c0_i32, %c0_i32_0 : i32, i32
  }
}

</mosaic_0001>

<llo_original>
// kernel: tpu_custom_call.1
$region0: #{tpu_custom_call.1}
  #allocation0 [shape = 'u32[]', space=smem, size = 0x4, offset = 0x4, fixed_abs, tag = 'smem constant byte address 0x4 - core index']
  #allocation1 [shape = 'u32[72,128]{1,0:T(1,128)}', space=vmem, size = 0x9000, scoped, tag = 'internal scratch']
  %s0 = inlined_call_operand.vmem [shape: f32[4,512], index: 0, kind: input, shape index: {}]
  %s1 = inlined_call_operand.vmem [shape: f32[16,4], index: 1, kind: input, shape index: {}]
  %s2 = inlined_call_operand.vmem [shape: f32[16,1], index: 2, kind: input, shape index: {}]
  %s3 = inlined_call_operand.vmem [shape: f32[8,8], index: 3, kind: input, shape index: {}]
  %s4 = inlined_call_operand.vmem [shape: f32[8,1], index: 4, kind: input, shape index: {}]
  %s5 = inlined_call_operand.vmem [shape: f32[8,72], index: 5, kind: input, shape index: {}]
  %s6 = inlined_call_operand.vmem [shape: f32[8,1], index: 6, kind: input, shape index: {}]
  %s7 = inlined_call_operand.hbm [shape: f32[9,512], index: 7, kind: input, shape index: {}]
  %s8 = inlined_call_operand.hbm [shape: f32[8,512], index: 8, kind: output, shape index: {}]
  %s9 = sld [smem:[#allocation0]]
  $region46: #{tpu_custom_call.1} parent=0
    _
  %s11 = ssub.s32 1, %s9
  %s12 = scalar_select 0, %s11, %s9
  $region1: #{tpu_custom_call.1} parent=0
    #allocation2 [shape = 'u8[32768]{0}', space=vmem, size = 0x8000, scoped, tag = 'input window, operand 7, single buffered']
    #allocation3 [shape = 's32[1]{0}', space=sflag, size = 0x4, scoped, tag = 'scoped memory for tpu_custom_call.1']
    #allocation4 [shape = 's32[1]{0}', space=sflag, size = 0x4, scoped, tag = 'scoped memory for tpu_custom_call.1']
    #allocation5 [shape = 'u8[16384]{0}', space=vmem, size = 0x4000, scoped, tag = 'output window, operand 0, single buffered']
    %13 = vsyncpa [#allocation3], 0
    %14 = vsyncpa [#allocation4], 0
    // Predicated region
    $region2: #{tpu_custom_call.1} parent=1 // pred_check
      _
    $region3: #{tpu_custom_call.1} parent=1 // pred_check_branch
      %16 = sbr.rel (0) target = $region5
    $region4: #{tpu_custom_call.1} parent=1 // pred_region
      _
    $region5: #{tpu_custom_call.1} parent=1 // pred_fallthru
      _
    // Predicated region
    $region6: #{tpu_custom_call.1} parent=1 // pred_check
      _
    $region7: #{tpu_custom_call.1} parent=1 // pred_check_branch
      %18 = sbr.rel (0) target = $region9
    $region8: #{tpu_custom_call.1} parent=1 // pred_region
      _
    $region9: #{tpu_custom_call.1} parent=1 // pred_fallthru
      _
    // Predicated region
    $region10: #{tpu_custom_call.1} parent=1 // pred_check
      _
    $region11: #{tpu_custom_call.1} parent=1 // pred_check_branch
      %20 = sbr.rel (0) target = $region13
    $region12: #{tpu_custom_call.1} parent=1 // pred_region
      _
    $region13: #{tpu_custom_call.1} parent=1 // pred_fallthru
      _
    // Predicated region
    $region14: #{tpu_custom_call.1} parent=1 // pred_check
      _
    $region15: #{tpu_custom_call.1} parent=1 // pred_check_branch
      %22 = sbr.rel (0) target = $region17
    $region16: #{tpu_custom_call.1} parent=1 // pred_region
      _
    $region17: #{tpu_custom_call.1} parent=1 // pred_fallthru
      _
    // Predicated region
    $region18: #{tpu_custom_call.1} parent=1 // pred_check
      _
    $region19: #{tpu_custom_call.1} parent=1 // pred_check_branch
      %24 = sbr.rel (0) target = $region21
    $region20: #{tpu_custom_call.1} parent=1 // pred_region
      _
    $region21: #{tpu_custom_call.1} parent=1 // pred_fallthru
      _
    // Predicated region
    $region22: #{tpu_custom_call.1} parent=1 // pred_check
      _
    $region23: #{tpu_custom_call.1} parent=1 // pred_check_branch
      %26 = sbr.rel (0) target = $region25
    $region24: #{tpu_custom_call.1} parent=1 // pred_region
      _
    $region25: #{tpu_custom_call.1} parent=1 // pred_fallthru
      _
    // Predicated region
    $region26: #{tpu_custom_call.1} parent=1 // pred_check
      _
    $region27: #{tpu_custom_call.1} parent=1 // pred_check_branch
      %28 = sbr.rel (0) target = $region29
    $region28: #{tpu_custom_call.1} parent=1 // pred_region
      _
    $region29: #{tpu_custom_call.1} parent=1 // pred_fallthru
      _
    // Predicated region
    $region30: #{tpu_custom_call.1} parent=1 // pred_check
      _
    $region31: #{tpu_custom_call.1} parent=1 // pred_check_branch
      %30 = sbr.rel (0) target = $region33
    $region32: #{tpu_custom_call.1} parent=1 // pred_region
      %32 = vsyncadd [#allocation3], 0
      %s33 = sshll.u32 %s7, 4
      %s34 = int_to_ptr.hbm [resolvable:$true] %s33
      %s35 = sshll.u32 [#allocation2], 4
      %s36 = int_to_ptr.vmem [resolvable:$true] %s35
      %41 = dma.hbm_to_vmem [thread:$0]  %s34, 1024, %s36, [#allocation3], 512, 512, 32
    $region33: #{tpu_custom_call.1} parent=1 // pred_fallthru
      _
    // Predicated region
    $region34: #{tpu_custom_call.1} parent=1 // pred_check
      _
    $region35: #{tpu_custom_call.1} parent=1 // pred_check_branch
      %43 = sbr.rel (0) target = $region37
    $region36: #{tpu_custom_call.1} parent=1 // pred_region
      %45 = dma.done [#allocation3], 1024
    $region37: #{tpu_custom_call.1} parent=1 // pred_fallthru
      _
    %v46 = vld [vmem:[%s0] sm:$0xff]
    %v47 = vld [vmem:[%s0 + $0x8] sm:$0xff]
    %v48 = vld [vmem:[%s1] sm:$0xff]
    %v49 = vld [vmem:[%s1 + $0x8] sm:$0xff]
    %v50 = vld [vmem:[%s2] sm:$0xff]
    %v51 = vld [vmem:[%s2 + $0x8] sm:$0xff]
    %53 = vset.pattern.permute.xlu0 0
    %54 = vperm.xlu0 %53, %v50
    %v55 = vpop.permute.xlu0 %54
    %58 = vset.pattern.permute.xlu0 0
    %59 = vperm.xlu0 %58, %v51
    %v60 = vpop.permute.xlu0 %59
    %64 = vst [vmem:[#allocation1] ss:$2 sm:$0xff] %v46
    %s65 = scalar_lea.vmem [#allocation1], 16
    %66 = vst [vmem:[%s65] ss:$2 sm:$0xff] %v47
    %v67 = vld.sshfl [vmem:[#allocation1] sm:$0xff pattern:$0x75316420]
    %v68 = vld.sshfl [vmem:[#allocation1 + $0x8] sm:$0xff pattern:$0x75316420]
    %v69 = vld.sshfl [vmem:[#allocation1 + $0x10] sm:$0xff pattern:$0x75316420]
    %v70 = vld.sshfl [vmem:[#allocation1 + $0x18] sm:$0xff pattern:$0x75316420]
    %vm71 = vcmask 31744
    %v73 = vsel %vm71, %v48, 0
    %v76 = vsel %vm71, %v49, 0
    %vm78 = vcmask 1043456
    %v79 = vsel %vm78, %v67, 0
    %v81 = vsel %vm78, %v68, 0
    %v83 = vsel %vm78, %v69, 0
    %v85 = vsel %vm78, %v70, 0
    %87 = vmatpush.msra.mxu0 0.0
    %88 = vmatpush.msra.mxu0 0.0
    %89 = vmatpush.msra.mxu0 0.0
    %90 = vmatpush.msra.mxu0 0.0
    %91 = vmatpush.msra.mxu0 0.0
    %92 = vmatpush.msra.mxu0 0.0
    %93 = vmatpush.msra.mxu0 0.0
    %94 = vmatpush.msra.mxu0 0.0
    %95 = vmatpush.msra.mxu0 0.0
    %96 = vmatpush.msra.mxu0 0.0
    %97 = vmatpush.msra.mxu0 0.0
    %98 = vmatpush.msra.mxu0 0.0
    %99 = vmatpush.msra.mxu0 0.0
    %100 = vmatpush.msra.mxu0 0.0
    %101 = vmatpush.msra.mxu0 0.0
    %102 = vmatpush.msra.mxu0 %v79
    %103 = vmatmul.f32.gmra.mxu0 %v73
    %v104 = vpop.f32.mrf.mxu0
    %v105 = vadd.f32 %v55, %v104
    %106 = vmatmul.f32.gmra.mxu0 %v76
    %v107 = vpop.f32.mrf.mxu0
    %v108 = vadd.f32 %v60, %v107
    %109 = vdwg.mxu0
    %110 = vmatpush.msra.mxu0 0.0
    %111 = vmatpush.msra.mxu0 0.0
    %112 = vmatpush.msra.mxu0 0.0
    %113 = vmatpush.msra.mxu0 0.0
    %114 = vmatpush.msra.mxu0 0.0
    %115 = vmatpush.msra.mxu0 0.0
    %116 = vmatpush.msra.mxu0 0.0
    %117 = vmatpush.msra.mxu0 0.0
    %118 = vmatpush.msra.mxu0 0.0
    %119 = vmatpush.msra.mxu0 0.0
    %120 = vmatpush.msra.mxu0 0.0
    %121 = vmatpush.msra.mxu0 0.0
    %122 = vmatpush.msra.mxu0 0.0
    %123 = vmatpush.msra.mxu0 0.0
    %124 = vmatpush.msra.mxu0 0.0
    %125 = vmatpush.msra.mxu0 %v81
    %126 = vmatmul.f32.gmra.mxu0 %v73
    %v127 = vpop.f32.mrf.mxu0
    %v128 = vadd.f32 %v55, %v127
    %129 = vmatmul.f32.gmra.mxu0 %v76
    %v130 = vpop.f32.mrf.mxu0
    %v131 = vadd.f32 %v60, %v130
    %132 = vdwg.mxu0
    %133 = vmatpush.msra.mxu0 0.0
    %134 = vmatpush.msra.mxu0 0.0
    %135 = vmatpush.msra.mxu0 0.0
    %136 = vmatpush.msra.mxu0 0.0
    %137 = vmatpush.msra.mxu0 0.0
    %138 = vmatpush.msra.mxu0 0.0
    %139 = vmatpush.msra.mxu0 0.0
    %140 = vmatpush.msra.mxu0 0.0
    %141 = vmatpush.msra.mxu0 0.0
    %142 = vmatpush.msra.mxu0 0.0
    %143 = vmatpush.msra.mxu0 0.0
    %144 = vmatpush.msra.mxu0 0.0
    %145 = vmatpush.msra.mxu0 0.0
    %146 = vmatpush.msra.mxu0 0.0
    %147 = vmatpush.msra.mxu0 0.0
    %148 = vmatpush.msra.mxu0 %v83
    %149 = vmatmul.f32.gmra.mxu0 %v73
    %v150 = vpop.f32.mrf.mxu0
    %v151 = vadd.f32 %v55, %v150
    %152 = vmatmul.f32.gmra.mxu0 %v76
    %v153 = vpop.f32.mrf.mxu0
    %v154 = vadd.f32 %v60, %v153
    %155 = vdwg.mxu0
    %156 = vmatpush.msra.mxu0 0.0
    %157 = vmatpush.msra.mxu0 0.0
    %158 = vmatpush.msra.mxu0 0.0
    %159 = vmatpush.msra.mxu0 0.0
    %160 = vmatpush.msra.mxu0 0.0
    %161 = vmatpush.msra.mxu0 0.0
    %162 = vmatpush.msra.mxu0 0.0
    %163 = vmatpush.msra.mxu0 0.0
    %164 = vmatpush.msra.mxu0 0.0
    %165 = vmatpush.msra.mxu0 0.0
    %166 = vmatpush.msra.mxu0 0.0
    %167 = vmatpush.msra.mxu0 0.0
    %168 = vmatpush.msra.mxu0 0.0
    %169 = vmatpush.msra.mxu0 0.0
    %170 = vmatpush.msra.mxu0 0.0
    %171 = vmatpush.msra.mxu0 %v85
    %172 = vmatmul.f32.gmra.mxu0 %v73
    %v173 = vpop.f32.mrf.mxu0
    %v174 = vadd.f32 %v55, %v173
    %175 = vmatmul.f32.gmra.mxu0 %v76
    %v176 = vpop.f32.mrf.mxu0
    %v177 = vadd.f32 %v60, %v176
    %178 = vdwg.mxu0
    %v179 = vmul.f32 %v105, 0.1
    %v180 = vmul.f32 %v128, 0.1
    %v181 = vmul.f32 %v151, 0.1
    %v182 = vmul.f32 %v174, 0.1
    %v183 = vmax.f32 %v105, %v179
    %v184 = vmax.f32 %v128, %v180
    %v185 = vmax.f32 %v151, %v181
    %v186 = vmax.f32 %v174, %v182
    %v187 = vld [vmem:[%s3] sm:$0xff]
    %v188 = vld [vmem:[%s4] sm:$0xff]
    %190 = vset.pattern.permute.xlu0 0
    %191 = vperm.xlu0 %190, %v188
    %v192 = vpop.permute.xlu0 %191
    %vm194 = vcmask 64512
    %v196 = vsel %vm194, %v187, 0
    %198 = vmatpush.msra.mxu0 0.0
    %199 = vmatpush.msra.mxu0 0.0
    %200 = vmatpush.msra.mxu0 0.0
    %201 = vmatpush.msra.mxu0 0.0
    %202 = vmatpush.msra.mxu0 0.0
    %203 = vmatpush.msra.mxu0 0.0
    %204 = vmatpush.msra.mxu0 0.0
    %205 = vmatpush.msra.mxu0 0.0
    %206 = vmatpush.msra.mxu0 0.0
    %207 = vmatpush.msra.mxu0 0.0
    %208 = vmatpush.msra.mxu0 0.0
    %209 = vmatpush.msra.mxu0 0.0
    %210 = vmatpush.msra.mxu0 0.0
    %211 = vmatpush.msra.mxu0 0.0
    %212 = vmatpush.msra.mxu0 0.0
    %213 = vmatpush.msra.mxu0 %v183
    %214 = vmatmul.f32.gmra.mxu0 %v196
    %v215 = vpop.f32.mrf.mxu0
    %v216 = vadd.f32 %v192, %v215
    %217 = vdwg.mxu0
    %218 = vmatpush.msra.mxu0 0.0
    %219 = vmatpush.msra.mxu0 0.0
    %220 = vmatpush.msra.mxu0 0.0
    %221 = vmatpush.msra.mxu0 0.0
    %222 = vmatpush.msra.mxu0 0.0
    %223 = vmatpush.msra.mxu0 0.0
    %224 = vmatpush.msra.mxu0 0.0
    %225 = vmatpush.msra.mxu0 0.0
    %226 = vmatpush.msra.mxu0 0.0
    %227 = vmatpush.msra.mxu0 0.0
    %228 = vmatpush.msra.mxu0 0.0
    %229 = vmatpush.msra.mxu0 0.0
    %230 = vmatpush.msra.mxu0 0.0
    %231 = vmatpush.msra.mxu0 0.0
    %232 = vmatpush.msra.mxu0 0.0
    %233 = vmatpush.msra.mxu0 %v184
    %234 = vmatmul.f32.gmra.mxu0 %v196
    %v235 = vpop.f32.mrf.mxu0
    %v236 = vadd.f32 %v192, %v235
    %237 = vdwg.mxu0
    %238 = vmatpush.msra.mxu0 0.0
    %239 = vmatpush.msra.mxu0 0.0
    %240 = vmatpush.msra.mxu0 0.0
    %241 = vmatpush.msra.mxu0 0.0
    %242 = vmatpush.msra.mxu0 0.0
    %243 = vmatpush.msra.mxu0 0.0
    %244 = vmatpush.msra.mxu0 0.0
    %245 = vmatpush.msra.mxu0 0.0
    %246 = vmatpush.msra.mxu0 0.0
    %247 = vmatpush.msra.mxu0 0.0
    %248 = vmatpush.msra.mxu0 0.0
    %249 = vmatpush.msra.mxu0 0.0
    %250 = vmatpush.msra.mxu0 0.0
    %251 = vmatpush.msra.mxu0 0.0
    %252 = vmatpush.msra.mxu0 0.0
    %253 = vmatpush.msra.mxu0 %v185
    %254 = vmatmul.f32.gmra.mxu0 %v196
    %v255 = vpop.f32.mrf.mxu0
    %v256 = vadd.f32 %v192, %v255
    %257 = vdwg.mxu0
    %258 = vmatpush.msra.mxu0 0.0
    %259 = vmatpush.msra.mxu0 0.0
    %260 = vmatpush.msra.mxu0 0.0
    %261 = vmatpush.msra.mxu0 0.0
    %262 = vmatpush.msra.mxu0 0.0
    %263 = vmatpush.msra.mxu0 0.0
    %264 = vmatpush.msra.mxu0 0.0
    %265 = vmatpush.msra.mxu0 0.0
    %266 = vmatpush.msra.mxu0 0.0
    %267 = vmatpush.msra.mxu0 0.0
    %268 = vmatpush.msra.mxu0 0.0
    %269 = vmatpush.msra.mxu0 0.0
    %270 = vmatpush.msra.mxu0 0.0
    %271 = vmatpush.msra.mxu0 0.0
    %272 = vmatpush.msra.mxu0 0.0
    %273 = vmatpush.msra.mxu0 %v186
    %274 = vmatmul.f32.gmra.mxu0 %v196
    %v275 = vpop.f32.mrf.mxu0
    %v276 = vadd.f32 %v192, %v275
    %277 = vdwg.mxu0
    %v278 = vmul.f32 %v216, 0.1
    %v279 = vmul.f32 %v236, 0.1
    %v280 = vmul.f32 %v256, 0.1
    %v281 = vmul.f32 %v276, 0.1
    %v282 = vmax.f32 %v216, %v278
    %v283 = vmax.f32 %v236, %v279
    %v284 = vmax.f32 %v256, %v280
    %v285 = vmax.f32 %v276, %v281
    %286 = vrot.lane.b32.xlu0 %v282, 17
    %v287 = vpop.permute.xlu0 %286
    %288 = vrot.lane.b32.xlu0 %v283, 17
    %v289 = vpop.permute.xlu0 %288
    %290 = vrot.lane.b32.xlu0 %v284, 17
    %v291 = vpop.permute.xlu0 %290
    %292 = vrot.lane.b32.xlu0 %v285, 17
    %v293 = vpop.permute.xlu0 %292
    %v294 = vlaneseq
    %v295 = vand.u32 %v294, 127
    %vm296 = vcmp.lt.s32.totalorder %v295, 17
    %v297 = vsel %vm296, %v291, %v293
    %v298 = vsel %vm296, %v289, %v291
    %v299 = vsel %vm296, %v287, %v289
    %v300 = vsel %vm296, %v293, %v287
    %v301 = vld [vmem:[#allocation2] ss:$8 sm:$0xf]
    %v303 = vperm.slane %v301, 0
    %v304 = vperm.slane %v301, 1
    %v305 = vperm.slane %v301, 2
    %v306 = vperm.slane %v301, 3
    %v311 = vmul.f32 %v300, %v303
    %v312 = vmul.f32 %v299, %v304
    %v313 = vmul.f32 %v298, %v305
    %v314 = vmul.f32 %v297, %v306
    %315 = vrot.lane.b32.xlu0 %v282, 16
    %v316 = vpop.permute.xlu0 %315
    %317 = vrot.lane.b32.xlu0 %v283, 16
    %v318 = vpop.permute.xlu0 %317
    %319 = vrot.lane.b32.xlu0 %v284, 16
    %v320 = vpop.permute.xlu0 %319
    %321 = vrot.lane.b32.xlu0 %v285, 16
    %v322 = vpop.permute.xlu0 %321
    %vm323 = vcmp.lt.s32.totalorder %v295, 16
    %v324 = vsel %vm323, %v320, %v322
    %v325 = vsel %vm323, %v318, %v320
    %v326 = vsel %vm323, %v316, %v318
    %v327 = vsel %vm323, %v322, %v316
    %s328 = scalar_lea.vmem [#allocation2], 1
    %v329 = vld [vmem:[%s328] ss:$8 sm:$0xf]
    %v331 = vperm.slane %v329, 0
    %v332 = vperm.slane %v329, 1
    %v333 = vperm.slane %v329, 2
    %v334 = vperm.slane %v329, 3
    %v339 = vmul.f32 %v327, %v331
    %v340 = vmul.f32 %v326, %v332
    %v341 = vmul.f32 %v325, %v333
    %v342 = vmul.f32 %v324, %v334
    %343 = vrot.lane.b32.xlu0 %v282, 15
    %v344 = vpop.permute.xlu0 %343
    %345 = vrot.lane.b32.xlu0 %v283, 15
    %v346 = vpop.permute.xlu0 %345
    %347 = vrot.lane.b32.xlu0 %v284, 15
    %v348 = vpop.permute.xlu0 %347
    %349 = vrot.lane.b32.xlu0 %v285, 15
    %v350 = vpop.permute.xlu0 %349
    %vm351 = vcmp.lt.s32.totalorder %v295, 15
    %v352 = vsel %vm351, %v348, %v350
    %v353 = vsel %vm351, %v346, %v348
    %v354 = vsel %vm351, %v344, %v346
    %v355 = vsel %vm351, %v350, %v344
    %s356 = scalar_lea.vmem [#allocation2], 2
    %v357 = vld [vmem:[%s356] ss:$8 sm:$0xf]
    %v359 = vperm.slane %v357, 0
    %v360 = vperm.slane %v357, 1
    %v361 = vperm.slane %v357, 2
    %v362 = vperm.slane %v357, 3
    %v367 = vmul.f32 %v355, %v359
    %v368 = vmul.f32 %v354, %v360
    %v369 = vmul.f32 %v353, %v361
    %v370 = vmul.f32 %v352, %v362
    %371 = vrot.lane.b32.xlu0 %v282, 1
    %v372 = vpop.permute.xlu0 %371
    %373 = vrot.lane.b32.xlu0 %v283, 1
    %v374 = vpop.permute.xlu0 %373
    %375 = vrot.lane.b32.xlu0 %v284, 1
    %v376 = vpop.permute.xlu0 %375
    %377 = vrot.lane.b32.xlu0 %v285, 1
    %v378 = vpop.permute.xlu0 %377
    %vm379 = vcmp.lt.s32.totalorder %v295, 1
    %v380 = vsel %vm379, %v376, %v378
    %v381 = vsel %vm379, %v374, %v376
    %v382 = vsel %vm379, %v372, %v374
    %v383 = vsel %vm379, %v378, %v372
    %s384 = scalar_lea.vmem [#allocation2], 3
    %v385 = vld [vmem:[%s384] ss:$8 sm:$0xf]
    %v387 = vperm.slane %v385, 0
    %v388 = vperm.slane %v385, 1
    %v389 = vperm.slane %v385, 2
    %v390 = vperm.slane %v385, 3
    %v395 = vmul.f32 %v383, %v387
    %v396 = vmul.f32 %v382, %v388
    %v397 = vmul.f32 %v381, %v389
    %v398 = vmul.f32 %v380, %v390
    %399 = vrot.lane.b32.xlu0 %v282, 127
    %v400 = vpop.permute.xlu0 %399
    %401 = vrot.lane.b32.xlu0 %v283, 127
    %v402 = vpop.permute.xlu0 %401
    %403 = vrot.lane.b32.xlu0 %v284, 127
    %v404 = vpop.permute.xlu0 %403
    %405 = vrot.lane.b32.xlu0 %v285, 127
    %v406 = vpop.permute.xlu0 %405
    %vm407 = vcmp.lt.s32.totalorder %v295, 127
    %v408 = vsel %vm407, %v404, %v406
    %v409 = vsel %vm407, %v402, %v404
    %v410 = vsel %vm407, %v400, %v402
    %v411 = vsel %vm407, %v406, %v400
    %s412 = scalar_lea.vmem [#allocation2], 5
    %v413 = vld [vmem:[%s412] ss:$8 sm:$0xf]
    %v415 = vperm.slane %v413, 0
    %v416 = vperm.slane %v413, 1
    %v417 = vperm.slane %v413, 2
    %v418 = vperm.slane %v413, 3
    %v423 = vmul.f32 %v410, %v415
    %v424 = vmul.f32 %v409, %v416
    %v425 = vmul.f32 %v408, %v417
    %v426 = vmul.f32 %v411, %v418
    %427 = vrot.lane.b32.xlu0 %v282, 113
    %v428 = vpop.permute.xlu0 %427
    %429 = vrot.lane.b32.xlu0 %v283, 113
    %v430 = vpop.permute.xlu0 %429
    %431 = vrot.lane.b32.xlu0 %v284, 113
    %v432 = vpop.permute.xlu0 %431
    %433 = vrot.lane.b32.xlu0 %v285, 113
    %v434 = vpop.permute.xlu0 %433
    %vm435 = vcmp.lt.s32.totalorder %v295, 113
    %v436 = vsel %vm435, %v432, %v434
    %v437 = vsel %vm435, %v430, %v432
    %v438 = vsel %vm435, %v428, %v430
    %v439 = vsel %vm435, %v434, %v428
    %s440 = scalar_lea.vmem [#allocation2], 6
    %v441 = vld [vmem:[%s440] ss:$8 sm:$0xf]
    %v443 = vperm.slane %v441, 0
    %v444 = vperm.slane %v441, 1
    %v445 = vperm.slane %v441, 2
    %v446 = vperm.slane %v441, 3
    %v451 = vmul.f32 %v438, %v443
    %v452 = vmul.f32 %v437, %v444
    %v453 = vmul.f32 %v436, %v445
    %v454 = vmul.f32 %v439, %v446
    %455 = vrot.lane.b32.xlu0 %v282, 112
    %v456 = vpop.permute.xlu0 %455
    %457 = vrot.lane.b32.xlu0 %v283, 112
    %v458 = vpop.permute.xlu0 %457
    %459 = vrot.lane.b32.xlu0 %v284, 112
    %v460 = vpop.permute.xlu0 %459
    %461 = vrot.lane.b32.xlu0 %v285, 112
    %v462 = vpop.permute.xlu0 %461
    %vm463 = vcmp.lt.s32.totalorder %v295, 112
    %v464 = vsel %vm463, %v460, %v462
    %v465 = vsel %vm463, %v458, %v460
    %v466 = vsel %vm463, %v456, %v458
    %v467 = vsel %vm463, %v462, %v456
    %s468 = scalar_lea.vmem [#allocation2], 7
    %v469 = vld [vmem:[%s468] ss:$8 sm:$0xf]
    %v471 = vperm.slane %v469, 0
    %v472 = vperm.slane %v469, 1
    %v473 = vperm.slane %v469, 2
    %v474 = vperm.slane %v469, 3
    %v479 = vmul.f32 %v466, %v471
    %v480 = vmul.f32 %v465, %v472
    %v481 = vmul.f32 %v464, %v473
    %v482 = vmul.f32 %v467, %v474
    %483 = vrot.lane.b32.xlu0 %v282, 111
    %v484 = vpop.permute.xlu0 %483
    %485 = vrot.lane.b32.xlu0 %v283, 111
    %v486 = vpop.permute.xlu0 %485
    %487 = vrot.lane.b32.xlu0 %v284, 111
    %v488 = vpop.permute.xlu0 %487
    %489 = vrot.lane.b32.xlu0 %v285, 111
    %v490 = vpop.permute.xlu0 %489
    %vm491 = vcmp.lt.s32.totalorder %v295, 111
    %v492 = vsel %vm491, %v488, %v490
    %v493 = vsel %vm491, %v486, %v488
    %v494 = vsel %vm491, %v484, %v486
    %v495 = vsel %vm491, %v490, %v484
    %s496 = scalar_lea.vmem [#allocation2], 32
    %v497 = vld [vmem:[%s496] ss:$8 sm:$0xf]
    %v499 = vperm.slane %v497, 0
    %v500 = vperm.slane %v497, 1
    %v501 = vperm.slane %v497, 2
    %v502 = vperm.slane %v497, 3
    %v507 = vmul.f32 %v494, %v499
    %v508 = vmul.f32 %v493, %v500
    %v509 = vmul.f32 %v492, %v501
    %v510 = vmul.f32 %v495, %v502
    %v511 = vld [vmem:[%s5] sm:$0xff]
    %v512 = vld [vmem:[%s6] sm:$0xff]
    %514 = vset.pattern.permute.xlu0 0
    %515 = vperm.xlu0 %514, %v512
    %v516 = vpop.permute.xlu0 %515
    %vm518 = vcmask 588800
    %v520 = vsel %vm518, %v511, 0
    %522 = vmatpush.msra.mxu0 0.0
    %523 = vmatpush.msra.mxu0 0.0
    %524 = vmatpush.msra.mxu0 0.0
    %525 = vmatpush.msra.mxu0 0.0
    %526 = vmatpush.msra.mxu0 0.0
    %527 = vmatpush.msra.mxu0 0.0
    %528 = vmatpush.msra.mxu0 0.0
    %529 = vmatpush.msra.mxu0 %v507
    %530 = vmatpush.msra.mxu0 %v479
    %531 = vmatpush.msra.mxu0 %v451
    %532 = vmatpush.msra.mxu0 %v423
    %533 = vmatpush.msra.mxu0 %v282
    %534 = vmatpush.msra.mxu0 %v395
    %535 = vmatpush.msra.mxu0 %v367
    %536 = vmatpush.msra.mxu0 %v339
    %537 = vmatpush.msra.mxu0 %v311
    %538 = vmatmul.f32.gmra.mxu0 %v520
    %v539 = vpop.f32.mrf.mxu0
    %v540 = vadd.f32 %v516, %v539
    %541 = vdwg.mxu0
    %542 = vmatpush.msra.mxu0 0.0
    %543 = vmatpush.msra.mxu0 0.0
    %544 = vmatpush.msra.mxu0 0.0
    %545 = vmatpush.msra.mxu0 0.0
    %546 = vmatpush.msra.mxu0 0.0
    %547 = vmatpush.msra.mxu0 0.0
    %548 = vmatpush.msra.mxu0 0.0
    %549 = vmatpush.msra.mxu0 %v508
    %550 = vmatpush.msra.mxu0 %v480
    %551 = vmatpush.msra.mxu0 %v452
    %552 = vmatpush.msra.mxu0 %v424
    %553 = vmatpush.msra.mxu0 %v283
    %554 = vmatpush.msra.mxu0 %v396
    %555 = vmatpush.msra.mxu0 %v368
    %556 = vmatpush.msra.mxu0 %v340
    %557 = vmatpush.msra.mxu0 %v312
    %558 = vmatmul.f32.gmra.mxu0 %v520
    %v559 = vpop.f32.mrf.mxu0
    %v560 = vadd.f32 %v516, %v559
    %561 = vdwg.mxu0
    %562 = vmatpush.msra.mxu0 0.0
    %563 = vmatpush.msra.mxu0 0.0
    %564 = vmatpush.msra.mxu0 0.0
    %565 = vmatpush.msra.mxu0 0.0
    %566 = vmatpush.msra.mxu0 0.0
    %567 = vmatpush.msra.mxu0 0.0
    %568 = vmatpush.msra.mxu0 0.0
    %569 = vmatpush.msra.mxu0 %v509
    %570 = vmatpush.msra.mxu0 %v481
    %571 = vmatpush.msra.mxu0 %v453
    %572 = vmatpush.msra.mxu0 %v425
    %573 = vmatpush.msra.mxu0 %v284
    %574 = vmatpush.msra.mxu0 %v397
    %575 = vmatpush.msra.mxu0 %v369
    %576 = vmatpush.msra.mxu0 %v341
    %577 = vmatpush.msra.mxu0 %v313
    %578 = vmatmul.f32.gmra.mxu0 %v520
    %v579 = vpop.f32.mrf.mxu0
    %v580 = vadd.f32 %v516, %v579
    %581 = vdwg.mxu0
    %582 = vmatpush.msra.mxu0 0.0
    %583 = vmatpush.msra.mxu0 0.0
    %584 = vmatpush.msra.mxu0 0.0
    %585 = vmatpush.msra.mxu0 0.0
    %586 = vmatpush.msra.mxu0 0.0
    %587 = vmatpush.msra.mxu0 0.0
    %588 = vmatpush.msra.mxu0 0.0
    %589 = vmatpush.msra.mxu0 %v510
    %590 = vmatpush.msra.mxu0 %v482
    %591 = vmatpush.msra.mxu0 %v454
    %592 = vmatpush.msra.mxu0 %v426
    %593 = vmatpush.msra.mxu0 %v285
    %594 = vmatpush.msra.mxu0 %v398
    %595 = vmatpush.msra.mxu0 %v370
    %596 = vmatpush.msra.mxu0 %v342
    %597 = vmatpush.msra.mxu0 %v314
    %598 = vmatmul.f32.gmra.mxu0 %v520
    %v599 = vpop.f32.mrf.mxu0
    %v600 = vadd.f32 %v516, %v599
    %601 = vdwg.mxu0
    %v602 = vmul.f32 %v540, 0.1
    %v603 = vmul.f32 %v560, 0.1
    %v604 = vmul.f32 %v580, 0.1
    %v605 = vmul.f32 %v600, 0.1
    %v606 = vmax.f32 %v540, %v602
    %v607 = vmax.f32 %v560, %v603
    %v608 = vmax.f32 %v580, %v604
    %v609 = vmax.f32 %v600, %v605
    %v610 = vadd.f32 %v108, %v606
    %v611 = vadd.f32 %v131, %v607
    %v612 = vadd.f32 %v154, %v608
    %v613 = vadd.f32 %v177, %v609
    %614 = vst [vmem:[#allocation5] sm:$0xff] %v610
    %615 = vst [vmem:[#allocation5 + $0x8] sm:$0xff] %v611
    %616 = vst [vmem:[#allocation5 + $0x10] sm:$0xff] %v612
    %617 = vst [vmem:[#allocation5 + $0x18] sm:$0xff] %v613
    // Predicated region
    $region38: #{tpu_custom_call.1} parent=1 // pred_check
      _
    $region39: #{tpu_custom_call.1} parent=1 // pred_check_branch
      %619 = sbr.rel (0) target = $region41
    $region40: #{tpu_custom_call.1} parent=1 // pred_region
      %621 = vsyncadd [#allocation4], 0
      %s623 = sshll.u32 [#allocation5], 4
      %s624 = int_to_ptr.vmem [resolvable:$true] %s623
      %s625 = sshll.u32 %s8, 4
      %s626 = int_to_ptr.hbm [resolvable:$true] %s625
      %628 = dma.vmem_to_hbm [thread:$0]  %s624, 512, %s626, [#allocation4]
    $region41: #{tpu_custom_call.1} parent=1 // pred_fallthru
      _
    // Predicated region
    $region42: #{tpu_custom_call.1} parent=1 // pred_check
      _
    $region43: #{tpu_custom_call.1} parent=1 // pred_check_branch
      %630 = sbr.rel (0) target = $region45
    $region44: #{tpu_custom_call.1} parent=1 // pred_region
      %632 = dma.done [#allocation4], 512
    $region45: #{tpu_custom_call.1} parent=1 // pred_fallthru
      _
    %633 = vsyncpa [#allocation3], 1
    %634 = vsyncpa [#allocation4], 1

</llo_original>
